<compile_context>
chip_gen: v7x
topology: tpu7x:2x2x1
jax: 0.10.0
libtpu: 0.0.40
codegen_flags: <defaults>
</compile_context>

<pallas_src>
import functools

import jax
import jax.numpy as jnp
from jax.experimental import pallas as pl
from jax.experimental.pallas import tpu as pltpu

_LANES = 128
_SUBLANES = 8
_BN_EPS = 1e-5

_VMEM = pl.BlockSpec(memory_space=pltpu.MemorySpace.VMEM)


def _round_up(x, m):
    return ((x + m - 1) // m) * m


# ----------------------------- kernel -------------------------------------- #

def _mlp_fused_kernel(x_ref, w_ref, b_ref, gamma_ref, beta_ref, o_ref, *,
                      layer_num, k_dims, hidden_dim, output_dim):
    """Entire MLP in one kernel invocation (no grid; everything VMEM-resident).

    x_ref:     (N, input_dim)            true-shaped input
    w_ref:     (L, K_pad8, D_lane)       stacked weights; K padded to 8,
                                         out-features zero-padded to 128 lanes
    b_ref:     (1, output_dim)           bias of the FINAL linear only
    gamma_ref: (max(L-1,1), 1, hidden)   BN scale
    beta_ref:  (max(L-1,1), 1, hidden)   BN shift
    o_ref:     (N, output_dim)           true-shaped output
    """
    h = x_ref[...].astype(jnp.float32)                 # (N, input_dim)

    for layer in range(layer_num - 1):                  # static unroll (tiny L)
        k = k_dims[layer]
        w = w_ref[layer]                                 # (K_pad8, D_lane)
        if k != w.shape[0]:
            w = w[:k, :]                                 # static sublane slice
        y = jnp.dot(h, w, preferred_element_type=jnp.float32)   # (N, D_lane)
        if hidden_dim != y.shape[1]:
            y = y[:, :hidden_dim]                        # drop zero lanes
        # --- BatchNorm1d (training mode) folded into one affine + ReLU ------
        # NOTE: hidden-layer Linear bias omitted — exactly cancelled by the
        # mean subtraction below.
        mean = jnp.mean(y, axis=0, keepdims=True)        # (1, hidden)
        yc = y - mean                                    # centered, computed once
        var = jnp.mean(yc * yc, axis=0, keepdims=True)   # biased var (N divisor)
        scale = gamma_ref[layer] * jax.lax.rsqrt(var + _BN_EPS)  # EUP rsqrt
        h = jnp.maximum(yc * scale + beta_ref[layer], 0.0)       # (N, hidden)

    # Final Linear (with bias).
    k = k_dims[layer_num - 1]
    w = w_ref[layer_num - 1]
    if k != w.shape[0]:
        w = w[:k, :]
    y = jnp.dot(h, w, preferred_element_type=jnp.float32)        # (N, D_lane)
    if output_dim != y.shape[1]:
        y = y[:, :output_dim]
    o_ref[...] = (y + b_ref[...]).astype(o_ref.dtype)


# ----------------------------- wrapper -------------------------------------- #

@jax.jit
def mlp_forward(params, x):
    """Forward pass matching MLP.forward (training-mode BatchNorm)."""
    n, input_dim = x.shape
    w_stack = params["w_stack"]          # (L, K_pad8, D_lane)
    b_last = params["b_last"]            # (1, output_dim)
    gamma = params["gamma"]              # (max(L-1,1), 1, hidden_dim)
    beta = params["beta"]

    layer_num = w_stack.shape[0]
    hidden_dim = gamma.shape[-1]
    output_dim = b_last.shape[-1]
    d_lane = w_stack.shape[-1]
    k_dims = (input_dim,) + (hidden_dim,) * (layer_num - 1)
    out_dims = (hidden_dim,) * (layer_num - 1) + (output_dim,)

    kernel = functools.partial(
        _mlp_fused_kernel, layer_num=layer_num, k_dims=k_dims,
        hidden_dim=hidden_dim, output_dim=output_dim)

    # Real (unpadded) cost numbers.
    flops = int(sum(2 * n * k * o for k, o in zip(k_dims, out_dims)))
    transcendentals = (layer_num - 1) * hidden_dim
    bytes_accessed = int(x.nbytes + w_stack.nbytes + b_last.nbytes
                         + gamma.nbytes + beta.nbytes + 4 * n * output_dim)

    # One-line VMEM insurance for scaled-up models (v5e's scoped default is
    # only 16 MiB); at these sizes the clamp keeps it at the 16 MiB floor.
    vmem_need = int(4 * (x.size + w_stack.size + b_last.size + gamma.size
                         + beta.size + n * output_dim + 2 * n * d_lane))
    vmem_limit = int(min(max(2 * vmem_need, 16 * 2**20), 48 * 2**20))

    return pl.pallas_call(
        kernel,
        out_shape=jax.ShapeDtypeStruct((n, output_dim), jnp.float32),
        in_specs=[_VMEM] * 5,
        out_specs=_VMEM,
        cost_estimate=pl.CostEstimate(
            flops=flops,
            transcendentals=transcendentals,
            bytes_accessed=bytes_accessed),
        compiler_params=pltpu.CompilerParams(vmem_limit_bytes=vmem_limit),
    )(x.astype(jnp.float32), w_stack, b_last, gamma, beta)


# ----------------------------- parameter init ------------------------------- #

def init_mlp_params(key, input_dim, hidden_dim, output_dim, layer_num,
                    bias=True):
    """Init mimicking nn.Linear defaults (uniform +/- 1/sqrt(fan_in)).

    Returns (params, ref_params):
      params      — stacked arrays consumed by the fused kernel.  Weights are
                    stored as (in_features, out_features) (pre-transposed vs
                    PyTorch's (out, in)); K dim padded to a multiple of 8,
                    out-feature (lane) dim zero-padded to a multiple of 128.
      ref_params  — unpadded per-layer arrays for the pure-JAX reference.
    """
    if layer_num < 1:
        raise ValueError("number of layers should be positive!")

    if layer_num == 1:
        dims = [(input_dim, output_dim)]
    else:
        dims = [(input_dim, hidden_dim)]
        dims += [(hidden_dim, hidden_dim)] * (layer_num - 2)
        dims += [(hidden_dim, output_dim)]

    k_pad = _round_up(max(d_in for d_in, _ in dims), _SUBLANES)
    d_lane = _round_up(max(d_out for _, d_out in dims), _LANES)

    w_stack = jnp.zeros((layer_num, k_pad, d_lane), jnp.float32)
    b_last = jnp.zeros((1, output_dim), jnp.float32)
    ref_linears = []
    for i, (d_in, d_out) in enumerate(dims):
        key, wk, bk = jax.random.split(key, 3)
        bound = 1.0 / (d_in ** 0.5)
        w = jax.random.uniform(wk, (d_in, d_out), jnp.float32, -bound, bound)
        if bias:
            b = jax.random.uniform(bk, (d_out,), jnp.float32, -bound, bound)
        else:
            b = jnp.zeros((d_out,), jnp.float32)
        w_stack = w_stack.at[i, :d_in, :d_out].set(w)
        if i == layer_num - 1:
            b_last = b_last.at[0, :d_out].set(b)
        ref_linears.append((w, b))

    n_bn = max(layer_num - 1, 1)
    # BatchNorm1d defaults: gamma=1, beta=0 (true width, no lane padding — the
    # kernel slices activations back to hidden_dim before BN).
    gamma = jnp.ones((n_bn, 1, hidden_dim), jnp.float32)
    beta = jnp.zeros((n_bn, 1, hidden_dim), jnp.float32)

    params = {"w_stack": w_stack, "b_last": b_last,
              "gamma": gamma, "beta": beta}
    ref_params = {
        "linears": ref_linears,
        "batch_norms": [(jnp.ones((hidden_dim,), jnp.float32),
                         jnp.zeros((hidden_dim,), jnp.float32))
                        for _ in range(layer_num - 1)],
    }
    return params, ref_params


# ----------------------------- pure-JAX reference --------------------------- #

def mlp_reference(ref_params, x, layer_num):
    """Direct port of MLP.forward (keeps the hidden-layer bias, unpadded)."""
    if layer_num == 1:
        w, b = ref_params["linears"][0]
        return x @ w + b
    h = x
    for layer in range(layer_num - 1):
        w, b = ref_params["linears"][layer]
        y = h @ w + b
        mean = jnp.mean(y, axis=0, keepdims=True)
        var = jnp.mean(jnp.square(y - mean), axis=0, keepdims=True)
        y = (y - mean) * jax.lax.rsqrt(var + _BN_EPS)
        g, bb = ref_params["batch_norms"][layer]
        y = y * g + bb
        h = jnp.maximum(y, 0.0)
    w, b = ref_params["linears"][layer_num - 1]
    return h @ w + b


# ----------------------------- main ----------------------------------------- #

if __name__ == "__main__":
    key = jax.random.PRNGKey(0)
    key, xk, pk = jax.random.split(key, 3)

    batch = 16
    input_dim = 32
    hidden_dim = 32
    output_dim = 8
    layer_num = 3

    x = jax.random.normal(xk, (batch, input_dim), jnp.float32)
    params, ref_params = init_mlp_params(
        pk, input_dim, hidden_dim, output_dim, layer_num)

    out = mlp_forward(params, x)
    out = jax.block_until_ready(out)
    assert out.shape == (batch, output_dim)

    ref = mlp_reference(ref_params, x, layer_num)
    max_err = float(jnp.max(jnp.abs(out - ref)))
    assert jnp.allclose(out, ref, atol=1e-3, rtol=1e-3), f"max_err={max_err}"

    # Also exercise the layer_num == 1 (pure linear) path.
    key, pk1 = jax.random.split(key)
    params1, ref_params1 = init_mlp_params(
        pk1, input_dim, hidden_dim, output_dim, layer_num=1)
    out1 = jax.block_until_ready(mlp_forward(params1, x))
    ref1 = mlp_reference(ref_params1, x, 1)
    assert out1.shape == (batch, output_dim)
    assert jnp.allclose(out1, ref1, atol=1e-3, rtol=1e-3)

    print("KERNEL_OK")
</pallas_src>

<mosaic_0001>
module attributes {stable_mosaic.version = 11 : i64} {
  func.func @_mlp_fused_kernel(%arg0: memref<16x32xf32, #tpu.memory_space<vmem>>, %arg1: memref<3x32x128xf32, #tpu.memory_space<vmem>>, %arg2: memref<1x8xf32, #tpu.memory_space<vmem>>, %arg3: memref<2x1x32xf32, #tpu.memory_space<vmem>>, %arg4: memref<2x1x32xf32, #tpu.memory_space<vmem>>, %arg5: memref<16x8xf32, #tpu.memory_space<vmem>>) attributes {dimension_semantics = [], scalar_prefetch = 0 : i64, scratch_operands = 0 : i64, tpu.core_type = #tpu.core_type<tc>} {
    %c0 = arith.constant 0 : index
    %c0_0 = arith.constant 0 : index
    %0 = vector.load %arg0[%c0, %c0_0] : memref<16x32xf32, #tpu.memory_space<vmem>>, vector<16x32xf32>
    %c0_1 = arith.constant 0 : index
    %c0_2 = arith.constant 0 : index
    %c0_3 = arith.constant 0 : index
    %1 = vector.load %arg1[%c0_1, %c0_2, %c0_3] : memref<3x32x128xf32, #tpu.memory_space<vmem>>, vector<1x32x128xf32>
    %2 = vector.shape_cast %1 : vector<1x32x128xf32> to vector<32x128xf32>
    %cst = arith.constant dense<0.000000e+00> : vector<16x128xf32>
    %3 = tpu.matmul %0, %2, %cst {dimension_numbers = #tpu.dot_dimension_numbers<[1], [0], [0], [1], [0, 0, 1, 1], [], []>} : vector<16x32xf32>, vector<32x128xf32>, vector<16x128xf32> -> vector<16x128xf32>
    %4 = vector.extract_strided_slice %3 {offsets = [0, 0], sizes = [16, 32], strides = [1, 1]} : vector<16x128xf32> to vector<16x32xf32>
    %cst_4 = arith.constant dense<0.000000e+00> : vector<32xf32>
    %5 = vector.multi_reduction <add>, %4, %cst_4 [0] : vector<16x32xf32> to vector<32xf32>
    %6 = vector.shape_cast %5 : vector<32xf32> to vector<1x32xf32>
    %cst_5 = arith.constant 1.600000e+01 : f32
    %7 = vector.broadcast %cst_5 : f32 to vector<1x32xf32>
    %8 = arith.divf %6, %7 : vector<1x32xf32>
    %9 = vector.broadcast %8 : vector<1x32xf32> to vector<16x32xf32>
    %10 = arith.subf %4, %9 : vector<16x32xf32>
    %11 = arith.mulf %10, %10 : vector<16x32xf32>
    %cst_6 = arith.constant dense<0.000000e+00> : vector<32xf32>
    %12 = vector.multi_reduction <add>, %11, %cst_6 [0] : vector<16x32xf32> to vector<32xf32>
    %13 = vector.shape_cast %12 : vector<32xf32> to vector<1x32xf32>
    %cst_7 = arith.constant 1.600000e+01 : f32
    %14 = vector.broadcast %cst_7 : f32 to vector<1x32xf32>
    %15 = arith.divf %13, %14 : vector<1x32xf32>
    %c0_8 = arith.constant 0 : index
    %c0_9 = arith.constant 0 : index
    %c0_10 = arith.constant 0 : index
    %16 = vector.load %arg3[%c0_8, %c0_9, %c0_10] : memref<2x1x32xf32, #tpu.memory_space<vmem>>, vector<1x1x32xf32>
    %17 = vector.shape_cast %16 : vector<1x1x32xf32> to vector<1x32xf32>
    %cst_11 = arith.constant 9.99999974E-6 : f32
    %18 = vector.broadcast %cst_11 : f32 to vector<1x32xf32>
    %19 = arith.addf %15, %18 : vector<1x32xf32>
    %20 = math.rsqrt %19 : vector<1x32xf32>
    %21 = arith.mulf %17, %20 : vector<1x32xf32>
    %22 = vector.broadcast %21 : vector<1x32xf32> to vector<16x32xf32>
    %23 = arith.mulf %10, %22 : vector<16x32xf32>
    %c0_12 = arith.constant 0 : index
    %c0_13 = arith.constant 0 : index
    %c0_14 = arith.constant 0 : index
    %24 = vector.load %arg4[%c0_12, %c0_13, %c0_14] : memref<2x1x32xf32, #tpu.memory_space<vmem>>, vector<1x1x32xf32>
    %25 = vector.shape_cast %24 : vector<1x1x32xf32> to vector<1x32xf32>
    %26 = vector.broadcast %25 : vector<1x32xf32> to vector<16x32xf32>
    %27 = arith.addf %23, %26 : vector<16x32xf32>
    %cst_15 = arith.constant 0.000000e+00 : f32
    %28 = vector.broadcast %cst_15 : f32 to vector<16x32xf32>
    %29 = arith.maximumf %27, %28 : vector<16x32xf32>
    %c1 = arith.constant 1 : index
    %c0_16 = arith.constant 0 : index
    %c0_17 = arith.constant 0 : index
    %30 = vector.load %arg1[%c1, %c0_16, %c0_17] : memref<3x32x128xf32, #tpu.memory_space<vmem>>, vector<1x32x128xf32>
    %31 = vector.shape_cast %30 : vector<1x32x128xf32> to vector<32x128xf32>
    %cst_18 = arith.constant dense<0.000000e+00> : vector<16x128xf32>
    %32 = tpu.matmul %29, %31, %cst_18 {dimension_numbers = #tpu.dot_dimension_numbers<[1], [0], [0], [1], [0, 0, 1, 1], [], []>} : vector<16x32xf32>, vector<32x128xf32>, vector<16x128xf32> -> vector<16x128xf32>
    %33 = vector.extract_strided_slice %32 {offsets = [0, 0], sizes = [16, 32], strides = [1, 1]} : vector<16x128xf32> to vector<16x32xf32>
    %cst_19 = arith.constant dense<0.000000e+00> : vector<32xf32>
    %34 = vector.multi_reduction <add>, %33, %cst_19 [0] : vector<16x32xf32> to vector<32xf32>
    %35 = vector.shape_cast %34 : vector<32xf32> to vector<1x32xf32>
    %cst_20 = arith.constant 1.600000e+01 : f32
    %36 = vector.broadcast %cst_20 : f32 to vector<1x32xf32>
    %37 = arith.divf %35, %36 : vector<1x32xf32>
    %38 = vector.broadcast %37 : vector<1x32xf32> to vector<16x32xf32>
    %39 = arith.subf %33, %38 : vector<16x32xf32>
    %40 = arith.mulf %39, %39 : vector<16x32xf32>
    %cst_21 = arith.constant dense<0.000000e+00> : vector<32xf32>
    %41 = vector.multi_reduction <add>, %40, %cst_21 [0] : vector<16x32xf32> to vector<32xf32>
    %42 = vector.shape_cast %41 : vector<32xf32> to vector<1x32xf32>
    %cst_22 = arith.constant 1.600000e+01 : f32
    %43 = vector.broadcast %cst_22 : f32 to vector<1x32xf32>
    %44 = arith.divf %42, %43 : vector<1x32xf32>
    %c1_23 = arith.constant 1 : index
    %c0_24 = arith.constant 0 : index
    %c0_25 = arith.constant 0 : index
    %45 = vector.load %arg3[%c1_23, %c0_24, %c0_25] : memref<2x1x32xf32, #tpu.memory_space<vmem>>, vector<1x1x32xf32>
    %46 = vector.shape_cast %45 : vector<1x1x32xf32> to vector<1x32xf32>
    %cst_26 = arith.constant 9.99999974E-6 : f32
    %47 = vector.broadcast %cst_26 : f32 to vector<1x32xf32>
    %48 = arith.addf %44, %47 : vector<1x32xf32>
    %49 = math.rsqrt %48 : vector<1x32xf32>
    %50 = arith.mulf %46, %49 : vector<1x32xf32>
    %51 = vector.broadcast %50 : vector<1x32xf32> to vector<16x32xf32>
    %52 = arith.mulf %39, %51 : vector<16x32xf32>
    %c1_27 = arith.constant 1 : index
    %c0_28 = arith.constant 0 : index
    %c0_29 = arith.constant 0 : index
    %53 = vector.load %arg4[%c1_27, %c0_28, %c0_29] : memref<2x1x32xf32, #tpu.memory_space<vmem>>, vector<1x1x32xf32>
    %54 = vector.shape_cast %53 : vector<1x1x32xf32> to vector<1x32xf32>
    %55 = vector.broadcast %54 : vector<1x32xf32> to vector<16x32xf32>
    %56 = arith.addf %52, %55 : vector<16x32xf32>
    %cst_30 = arith.constant 0.000000e+00 : f32
    %57 = vector.broadcast %cst_30 : f32 to vector<16x32xf32>
    %58 = arith.maximumf %56, %57 : vector<16x32xf32>
    %c2 = arith.constant 2 : index
    %c0_31 = arith.constant 0 : index
    %c0_32 = arith.constant 0 : index
    %59 = vector.load %arg1[%c2, %c0_31, %c0_32] : memref<3x32x128xf32, #tpu.memory_space<vmem>>, vector<1x32x128xf32>
    %60 = vector.shape_cast %59 : vector<1x32x128xf32> to vector<32x128xf32>
    %cst_33 = arith.constant dense<0.000000e+00> : vector<16x128xf32>
    %61 = tpu.matmul %58, %60, %cst_33 {dimension_numbers = #tpu.dot_dimension_numbers<[1], [0], [0], [1], [0, 0, 1, 1], [], []>} : vector<16x32xf32>, vector<32x128xf32>, vector<16x128xf32> -> vector<16x128xf32>
    %62 = vector.extract_strided_slice %61 {offsets = [0, 0], sizes = [16, 8], strides = [1, 1]} : vector<16x128xf32> to vector<16x8xf32>
    %c0_34 = arith.constant 0 : index
    %c0_35 = arith.constant 0 : index
    %63 = vector.load %arg2[%c0_34, %c0_35] : memref<1x8xf32, #tpu.memory_space<vmem>>, vector<1x8xf32>
    %64 = vector.broadcast %63 : vector<1x8xf32> to vector<16x8xf32>
    %65 = arith.addf %62, %64 : vector<16x8xf32>
    %c0_36 = arith.constant 0 : index
    %c0_37 = arith.constant 0 : index
    %66 = vector.load %arg5[%c0_36, %c0_37] : memref<16x8xf32, #tpu.memory_space<vmem>>, vector<16x8xf32>
    tpu.vector_store %arg5[%c0_36, %c0_37], %65 {strides = array<i32>} : memref<16x8xf32, #tpu.memory_space<vmem>>, vector<16x8xf32>,
    return
  }
}

</mosaic_0001>

<llo_original>
// kernel: mlp_forward.1
$region0: #{mlp_forward.1}
  #allocation0 [shape = 'u32[]', space=smem, size = 0x4, offset = 0x4, fixed_abs, tag = 'smem constant byte address 0x4 - core index']
  #allocation1 [shape = 'u32[144,128]{1,0:T(1,128)}', space=vmem, size = 0x12000, scoped, tag = 'internal scratch']
  %s0 = inlined_call_operand.hbm [shape: f32[16,32], index: 0, kind: input, shape index: {}]
  %s1 = inlined_call_operand.hbm [shape: f32[3,32,128], index: 1, kind: input, shape index: {}]
  %s2 = inlined_call_operand.hbm [shape: f32[1,8], index: 2, kind: input, shape index: {}]
  %s3 = inlined_call_operand.vmem [shape: f32[2,1,32], index: 3, kind: input, shape index: {}]
  %s4 = inlined_call_operand.hbm [shape: f32[2,1,32], index: 4, kind: input, shape index: {}]
  %s5 = inlined_call_operand.vmem [shape: f32[16,8], index: 5, kind: output, shape index: {}]
  %s6 = sld [smem:[#allocation0]]
  $region46: #{mlp_forward.1} parent=0
    _
  %s8 = ssub.s32 1, %s6
  %s9 = scalar_select 0, %s8, %s6
  $region1: #{mlp_forward.1} parent=0
    #allocation2 [shape = 'u8[8192]{0}', space=vmem, size = 0x2000, scoped, tag = 'input window, operand 0, single buffered']
    #allocation3 [shape = 's32[1]{0}', space=sflag, size = 0x4, scoped, tag = 'scoped memory for mlp_forward.1']
    #allocation4 [shape = 'u8[49152]{0}', space=vmem, size = 0xc000, scoped, tag = 'input window, operand 1, single buffered']
    #allocation5 [shape = 's32[1]{0}', space=sflag, size = 0x4, scoped, tag = 'scoped memory for mlp_forward.1']
    #allocation6 [shape = 'u8[512]{0}', space=vmem, size = 0x400, scoped, tag = 'input window, operand 2, single buffered']
    #allocation7 [shape = 'u8[1024]{0}', space=vmem, size = 0x400, scoped, tag = 'input window, operand 4, single buffered']
    #allocation8 [shape = 's32[1]{0}', space=sflag, size = 0x4, scoped, tag = 'scoped memory for mlp_forward.1']
    %10 = vsyncpa [#allocation3], 0
    %11 = vsyncpa [#allocation5], 0
    %12 = vsyncpa [#allocation8], 0
    // Predicated region
    $region2: #{mlp_forward.1} parent=1 // pred_check
      _
    $region3: #{mlp_forward.1} parent=1 // pred_check_branch
      %14 = sbr.rel (0) target = $region5
    $region4: #{mlp_forward.1} parent=1 // pred_region
      %s16 = ssub.s32 256, 256
      %17 = vsyncadd [#allocation3], %s16
      %s18 = sshll.u32 [#allocation2], 4
      %s19 = int_to_ptr.vmem [resolvable:$true] %s18
      %24 = dma.hbm_to_vmem [thread:$0]  %s0, 256, %s19, [#allocation3], 128, 128, 8
    $region5: #{mlp_forward.1} parent=1 // pred_fallthru
      _
    // Predicated region
    $region6: #{mlp_forward.1} parent=1 // pred_check
      _
    $region7: #{mlp_forward.1} parent=1 // pred_check_branch
      %26 = sbr.rel (0) target = $region9
    $region8: #{mlp_forward.1} parent=1 // pred_region
      %s28 = ssub.s32 1536, 1536
      %29 = vsyncadd [#allocation5], %s28
      %s30 = sshll.u32 [#allocation4], 4
      %s31 = int_to_ptr.vmem [resolvable:$true] %s30
      %36 = dma.hbm_to_vmem [thread:$0]  %s1, 1536, %s31, [#allocation5], 128, 128, 8
    $region9: #{mlp_forward.1} parent=1 // pred_fallthru
      _
    // Predicated region
    $region10: #{mlp_forward.1} parent=1 // pred_check
      _
    $region11: #{mlp_forward.1} parent=1 // pred_check_branch
      %38 = sbr.rel (0) target = $region13
    $region12: #{mlp_forward.1} parent=1 // pred_region
      %s40 = ssub.s32 16, 16
      %41 = vsyncadd [#allocation5], %s40
      %s43 = sshll.u32 [#allocation6], 4
      %s44 = int_to_ptr.vmem [resolvable:$true] %s43
      %46 = dma.hbm_to_vmem [thread:$0]  %s2, 16, %s44, [#allocation5]
    $region13: #{mlp_forward.1} parent=1 // pred_fallthru
      _
    // Predicated region
    $region14: #{mlp_forward.1} parent=1 // pred_check
      _
    $region15: #{mlp_forward.1} parent=1 // pred_check_branch
      %48 = sbr.rel (0) target = $region17
    $region16: #{mlp_forward.1} parent=1 // pred_region
      _
    $region17: #{mlp_forward.1} parent=1 // pred_fallthru
      _
    // Predicated region
    $region18: #{mlp_forward.1} parent=1 // pred_check
      _
    $region19: #{mlp_forward.1} parent=1 // pred_check_branch
      %50 = sbr.rel (0) target = $region21
    $region20: #{mlp_forward.1} parent=1 // pred_region
      %s52 = ssub.s32 32, 32
      %53 = vsyncadd [#allocation8], %s52
      %s54 = sshll.u32 [#allocation7], 4
      %s55 = int_to_ptr.vmem [resolvable:$true] %s54
      %60 = dma.hbm_to_vmem [thread:$0]  %s4, 32, %s55, [#allocation8], 16, 16, 1
    $region21: #{mlp_forward.1} parent=1 // pred_fallthru
      _
    // Predicated region
    $region22: #{mlp_forward.1} parent=1 // pred_check
      _
    $region23: #{mlp_forward.1} parent=1 // pred_check_branch
      %62 = sbr.rel (0) target = $region25
    $region24: #{mlp_forward.1} parent=1 // pred_region
      %63 = dma.done [#allocation3], 256
    $region25: #{mlp_forward.1} parent=1 // pred_fallthru
      _
    // Predicated region
    $region26: #{mlp_forward.1} parent=1 // pred_check
      _
    $region27: #{mlp_forward.1} parent=1 // pred_check_branch
      %65 = sbr.rel (0) target = $region29
    $region28: #{mlp_forward.1} parent=1 // pred_region
      %66 = dma.done [#allocation5], 1536
    $region29: #{mlp_forward.1} parent=1 // pred_fallthru
      _
    // Predicated region
    $region30: #{mlp_forward.1} parent=1 // pred_check
      _
    $region31: #{mlp_forward.1} parent=1 // pred_check_branch
      %68 = sbr.rel (0) target = $region33
    $region32: #{mlp_forward.1} parent=1 // pred_region
      %69 = dma.done [#allocation5], 16
    $region33: #{mlp_forward.1} parent=1 // pred_fallthru
      _
    // Predicated region
    $region34: #{mlp_forward.1} parent=1 // pred_check
      _
    $region35: #{mlp_forward.1} parent=1 // pred_check_branch
      %71 = sbr.rel (0) target = $region37
    $region36: #{mlp_forward.1} parent=1 // pred_region
      %72 = dma.done [#allocation8], 32
    $region37: #{mlp_forward.1} parent=1 // pred_fallthru
      _
    %v73 = vld [vmem:[#allocation2] sm:$0xff]
    %v74 = vld [vmem:[#allocation2 + $0x8] sm:$0xff]
    %v75 = vld [vmem:[#allocation4] sm:$0xff]
    %v76 = vld [vmem:[#allocation4 + $0x8] sm:$0xff]
    %v77 = vld [vmem:[#allocation4 + $0x10] sm:$0xff]
    %v78 = vld [vmem:[#allocation4 + $0x18] sm:$0xff]
    %vm79 = vcmask 261120
    %v81 = vsel %vm79, %v73, 0
    %v84 = vsel %vm79, %v74, 0
    %86 = vmatprep.subr.mxu0 0.0
    %87 = vmatpush1.msra.mxu0 %v75
    %88 = vmatprep.subr.mxu0 0.0
    %89 = vmatpush1.msra.mxu0 %v76
    %90 = vmatprep.subr.mxu0 0.0
    %91 = vmatpush1.msra.mxu0 %v77
    %92 = vmatprep.subr.mxu0 0.0
    %93 = vmatpush1.msra.mxu0 %v78
    %94 = vmatprep.subr.mxu0 0.0
    %95 = vmatpush1.msra.mxu0 0.0
    %96 = vmatprep.subr.mxu0 0.0
    %97 = vmatpush1.msra.mxu0 0.0
    %98 = vmatprep.subr.mxu0 0.0
    %99 = vmatpush1.msra.mxu0 0.0
    %100 = vmatprep.subr.mxu0 0.0
    %101 = vmatpush1.msra.mxu0 0.0
    %102 = vmatprep.subr.mxu0 0.0
    %103 = vmatpush1.msra.mxu0 0.0
    %104 = vmatprep.subr.mxu0 0.0
    %105 = vmatpush1.msra.mxu0 0.0
    %106 = vmatprep.subr.mxu0 0.0
    %107 = vmatpush1.msra.mxu0 0.0
    %108 = vmatprep.subr.mxu0 0.0
    %109 = vmatpush1.msra.mxu0 0.0
    %110 = vmatprep.subr.mxu0 0.0
    %111 = vmatpush1.msra.mxu0 0.0
    %112 = vmatprep.subr.mxu0 0.0
    %113 = vmatpush1.msra.mxu0 0.0
    %114 = vmatprep.subr.mxu0 0.0
    %115 = vmatpush1.msra.mxu0 0.0
    %116 = vmatprep.subr.mxu0 0.0
    %117 = vmatpush1.msra.mxu0 0.0
    %118 = vmatprep.subr.mxu0 0.0
    %119 = vmatpush1.msra.mxu0 0.0
    %120 = vmatprep.subr.mxu0 0.0
    %121 = vmatpush1.msra.mxu0 0.0
    %122 = vmatprep.subr.mxu0 0.0
    %123 = vmatpush1.msra.mxu0 0.0
    %124 = vmatprep.subr.mxu0 0.0
    %125 = vmatpush1.msra.mxu0 0.0
    %126 = vmatprep.subr.mxu0 0.0
    %127 = vmatpush1.msra.mxu0 0.0
    %128 = vmatprep.subr.mxu0 0.0
    %129 = vmatpush1.msra.mxu0 0.0
    %130 = vmatprep.subr.mxu0 0.0
    %131 = vmatpush1.msra.mxu0 0.0
    %132 = vmatprep.subr.mxu0 0.0
    %133 = vmatpush1.msra.mxu0 0.0
    %134 = vmatprep.subr.mxu0 0.0
    %135 = vmatpush1.msra.mxu0 0.0
    %136 = vmatprep.subr.mxu0 0.0
    %137 = vmatpush1.msra.mxu0 0.0
    %138 = vmatprep.subr.mxu0 0.0
    %139 = vmatpush1.msra.mxu0 0.0
    %140 = vmatprep.subr.mxu0 0.0
    %141 = vmatpush1.msra.mxu0 0.0
    %142 = vmatprep.subr.mxu0 0.0
    %143 = vmatpush1.msra.mxu0 0.0
    %144 = vmatprep.subr.mxu0 0.0
    %145 = vmatpush1.msra.mxu0 0.0
    %146 = vmatprep.subr.mxu0 0.0
    %147 = vmatpush1.msra.mxu0 0.0
    %148 = vmatprep.subr.mxu0 0.0
    %149 = vmatpush1.msra.mxu0 0.0
    %150 = vmatprep.mubr.f32.mxu0 0.0
    %151 = vmatmul.mubr.f32.gmra.mrb[0].mxu0 %v81
    %v152 = vpop.f32.mrb[0].mxu0
    %v153 = vadd.f32 0.0, %v152
    %v154 = vpop.f32.mrb[0].mxu0
    %155 = vmatprep.mubr.f32.mxu0 0.0
    %156 = vmatmul.mubr.f32.gmra.mrb[0].mxu0 %v84
    %v157 = vpop.f32.mrb[0].mxu0
    %v158 = vadd.f32 0.0, %v157
    %v159 = vpop.f32.mrb[0].mxu0
    %160 = vdwg.mxu0
    %v161 = vsel %vm79, %v153, 0.0
    %v162 = vsel %vm79, %v158, 0.0
    %v163 = vadd.f32 %v161, %v162
    %v164 = vrot.slane %v163, 4
    %v165 = vadd.f32 %v163, %v164
    %v166 = vrot.slane %v165, 2
    %v167 = vadd.f32 %v165, %v166
    %v168 = vrot.slane %v167, 1
    %v169 = vadd.f32 %v167, %v168
    %v170 = vrcp.pop 16.0
    %v171 = vmul.f32 %v169, %v170
    %v172 = vsub.f32 %v153, %v171
    %v173 = vsub.f32 %v158, %v171
    %v174 = vmul.f32 %v172, %v172
    %v175 = vmul.f32 %v173, %v173
    %v176 = vsel %vm79, %v174, 0.0
    %v177 = vsel %vm79, %v175, 0.0
    %v178 = vadd.f32 %v176, %v177
    %v179 = vrot.slane %v178, 4
    %v180 = vadd.f32 %v178, %v179
    %v181 = vrot.slane %v180, 2
    %v182 = vadd.f32 %v180, %v181
    %v183 = vrot.slane %v182, 1
    %v184 = vadd.f32 %v182, %v183
    %v185 = vmul.f32 %v184, %v170
    %v186 = vld [vmem:[%s3] sm:$0x1]
    %v187 = vadd.f32 %v185, 1e-05
    %v188 = vrsqrt.pop %v187
    %v189 = vmul.f32 %v186, %v188
    %v191 = vlaneseq
    %v192 = vshrl.u32 %v191, 7
    %v193 = vsub.s32 0, %v192
    %v194 = vrot.slane %v189, %v193
    %v196 = vmul.f32 %v172, %v194
    %v197 = vmul.f32 %v173, %v194
    %v198 = vld [vmem:[#allocation7] sm:$0x1]
    %v200 = vlaneseq
    %v201 = vshrl.u32 %v200, 7
    %v202 = vsub.s32 0, %v201
    %v203 = vrot.slane %v198, %v202
    %v205 = vadd.f32 %v196, %v203
    %v206 = vadd.f32 %v197, %v203
    %v207 = vmax.f32 %v205, 0.0
    %v208 = vmax.f32 %v206, 0.0
    %s209 = scalar_lea.vmem [#allocation4], 32
    %v210 = vld [vmem:[%s209] sm:$0xff]
    %v211 = vld [vmem:[%s209 + $0x8] sm:$0xff]
    %v212 = vld [vmem:[%s209 + $0x10] sm:$0xff]
    %v213 = vld [vmem:[%s209 + $0x18] sm:$0xff]
    %v215 = vsel %vm79, %v207, 0
    %v218 = vsel %vm79, %v208, 0
    %220 = vmatprep.subr.mxu0 0.0
    %221 = vmatpush1.msra.mxu0 %v210
    %222 = vmatprep.subr.mxu0 0.0
    %223 = vmatpush1.msra.mxu0 %v211
    %224 = vmatprep.subr.mxu0 0.0
    %225 = vmatpush1.msra.mxu0 %v212
    %226 = vmatprep.subr.mxu0 0.0
    %227 = vmatpush1.msra.mxu0 %v213
    %228 = vmatprep.subr.mxu0 0.0
    %229 = vmatpush1.msra.mxu0 0.0
    %230 = vmatprep.subr.mxu0 0.0
    %231 = vmatpush1.msra.mxu0 0.0
    %232 = vmatprep.subr.mxu0 0.0
    %233 = vmatpush1.msra.mxu0 0.0
    %234 = vmatprep.subr.mxu0 0.0
    %235 = vmatpush1.msra.mxu0 0.0
    %236 = vmatprep.subr.mxu0 0.0
    %237 = vmatpush1.msra.mxu0 0.0
    %238 = vmatprep.subr.mxu0 0.0
    %239 = vmatpush1.msra.mxu0 0.0
    %240 = vmatprep.subr.mxu0 0.0
    %241 = vmatpush1.msra.mxu0 0.0
    %242 = vmatprep.subr.mxu0 0.0
    %243 = vmatpush1.msra.mxu0 0.0
    %244 = vmatprep.subr.mxu0 0.0
    %245 = vmatpush1.msra.mxu0 0.0
    %246 = vmatprep.subr.mxu0 0.0
    %247 = vmatpush1.msra.mxu0 0.0
    %248 = vmatprep.subr.mxu0 0.0
    %249 = vmatpush1.msra.mxu0 0.0
    %250 = vmatprep.subr.mxu0 0.0
    %251 = vmatpush1.msra.mxu0 0.0
    %252 = vmatprep.subr.mxu0 0.0
    %253 = vmatpush1.msra.mxu0 0.0
    %254 = vmatprep.subr.mxu0 0.0
    %255 = vmatpush1.msra.mxu0 0.0
    %256 = vmatprep.subr.mxu0 0.0
    %257 = vmatpush1.msra.mxu0 0.0
    %258 = vmatprep.subr.mxu0 0.0
    %259 = vmatpush1.msra.mxu0 0.0
    %260 = vmatprep.subr.mxu0 0.0
    %261 = vmatpush1.msra.mxu0 0.0
    %262 = vmatprep.subr.mxu0 0.0
    %263 = vmatpush1.msra.mxu0 0.0
    %264 = vmatprep.subr.mxu0 0.0
    %265 = vmatpush1.msra.mxu0 0.0
    %266 = vmatprep.subr.mxu0 0.0
    %267 = vmatpush1.msra.mxu0 0.0
    %268 = vmatprep.subr.mxu0 0.0
    %269 = vmatpush1.msra.mxu0 0.0
    %270 = vmatprep.subr.mxu0 0.0
    %271 = vmatpush1.msra.mxu0 0.0
    %272 = vmatprep.subr.mxu0 0.0
    %273 = vmatpush1.msra.mxu0 0.0
    %274 = vmatprep.subr.mxu0 0.0
    %275 = vmatpush1.msra.mxu0 0.0
    %276 = vmatprep.subr.mxu0 0.0
    %277 = vmatpush1.msra.mxu0 0.0
    %278 = vmatprep.subr.mxu0 0.0
    %279 = vmatpush1.msra.mxu0 0.0
    %280 = vmatprep.subr.mxu0 0.0
    %281 = vmatpush1.msra.mxu0 0.0
    %282 = vmatprep.subr.mxu0 0.0
    %283 = vmatpush1.msra.mxu0 0.0
    %284 = vmatprep.mubr.f32.mxu0 0.0
    %285 = vmatmul.mubr.f32.gmra.mrb[0].mxu0 %v215
    %v286 = vpop.f32.mrb[0].mxu0
    %v287 = vadd.f32 0.0, %v286
    %v288 = vpop.f32.mrb[0].mxu0
    %289 = vmatprep.mubr.f32.mxu0 0.0
    %290 = vmatmul.mubr.f32.gmra.mrb[0].mxu0 %v218
    %v291 = vpop.f32.mrb[0].mxu0
    %v292 = vadd.f32 0.0, %v291
    %v293 = vpop.f32.mrb[0].mxu0
    %294 = vdwg.mxu0
    %v295 = vsel %vm79, %v287, 0.0
    %v296 = vsel %vm79, %v292, 0.0
    %v297 = vadd.f32 %v295, %v296
    %v298 = vrot.slane %v297, 4
    %v299 = vadd.f32 %v297, %v298
    %v300 = vrot.slane %v299, 2
    %v301 = vadd.f32 %v299, %v300
    %v302 = vrot.slane %v301, 1
    %v303 = vadd.f32 %v301, %v302
    %v304 = vmul.f32 %v303, %v170
    %v305 = vsub.f32 %v287, %v304
    %v306 = vsub.f32 %v292, %v304
    %v307 = vmul.f32 %v305, %v305
    %v308 = vmul.f32 %v306, %v306
    %v309 = vsel %vm79, %v307, 0.0
    %v310 = vsel %vm79, %v308, 0.0
    %v311 = vadd.f32 %v309, %v310
    %v312 = vrot.slane %v311, 4
    %v313 = vadd.f32 %v311, %v312
    %v314 = vrot.slane %v313, 2
    %v315 = vadd.f32 %v313, %v314
    %v316 = vrot.slane %v315, 1
    %v317 = vadd.f32 %v315, %v316
    %v318 = vmul.f32 %v317, %v170
    %s319 = scalar_lea.vmem %s3, 1
    %v320 = vld [vmem:[%s319] sm:$0x1]
    %v321 = vadd.f32 %v318, 1e-05
    %v322 = vrsqrt.pop %v321
    %v323 = vmul.f32 %v320, %v322
    %v325 = vlaneseq
    %v326 = vshrl.u32 %v325, 7
    %v327 = vsub.s32 0, %v326
    %v328 = vrot.slane %v323, %v327
    %v330 = vmul.f32 %v305, %v328
    %v331 = vmul.f32 %v306, %v328
    %s332 = scalar_lea.vmem [#allocation7], 1
    %v333 = vld [vmem:[%s332] sm:$0x1]
    %v335 = vlaneseq
    %v336 = vshrl.u32 %v335, 7
    %v337 = vsub.s32 0, %v336
    %v338 = vrot.slane %v333, %v337
    %v340 = vadd.f32 %v330, %v338
    %v341 = vadd.f32 %v331, %v338
    %v342 = vmax.f32 %v340, 0.0
    %v343 = vmax.f32 %v341, 0.0
    %s344 = scalar_lea.vmem [#allocation4], 64
    %v345 = vld [vmem:[%s344] sm:$0xff]
    %v346 = vld [vmem:[%s344 + $0x8] sm:$0xff]
    %v347 = vld [vmem:[%s344 + $0x10] sm:$0xff]
    %v348 = vld [vmem:[%s344 + $0x18] sm:$0xff]
    %v350 = vsel %vm79, %v342, 0
    %v353 = vsel %vm79, %v343, 0
    %355 = vmatprep.subr.mxu0 0.0
    %356 = vmatpush1.msra.mxu0 %v345
    %357 = vmatprep.subr.mxu0 0.0
    %358 = vmatpush1.msra.mxu0 %v346
    %359 = vmatprep.subr.mxu0 0.0
    %360 = vmatpush1.msra.mxu0 %v347
    %361 = vmatprep.subr.mxu0 0.0
    %362 = vmatpush1.msra.mxu0 %v348
    %363 = vmatprep.subr.mxu0 0.0
    %364 = vmatpush1.msra.mxu0 0.0
    %365 = vmatprep.subr.mxu0 0.0
    %366 = vmatpush1.msra.mxu0 0.0
    %367 = vmatprep.subr.mxu0 0.0
    %368 = vmatpush1.msra.mxu0 0.0
    %369 = vmatprep.subr.mxu0 0.0
    %370 = vmatpush1.msra.mxu0 0.0
    %371 = vmatprep.subr.mxu0 0.0
    %372 = vmatpush1.msra.mxu0 0.0
    %373 = vmatprep.subr.mxu0 0.0
    %374 = vmatpush1.msra.mxu0 0.0
    %375 = vmatprep.subr.mxu0 0.0
    %376 = vmatpush1.msra.mxu0 0.0
    %377 = vmatprep.subr.mxu0 0.0
    %378 = vmatpush1.msra.mxu0 0.0
    %379 = vmatprep.subr.mxu0 0.0
    %380 = vmatpush1.msra.mxu0 0.0
    %381 = vmatprep.subr.mxu0 0.0
    %382 = vmatpush1.msra.mxu0 0.0
    %383 = vmatprep.subr.mxu0 0.0
    %384 = vmatpush1.msra.mxu0 0.0
    %385 = vmatprep.subr.mxu0 0.0
    %386 = vmatpush1.msra.mxu0 0.0
    %387 = vmatprep.subr.mxu0 0.0
    %388 = vmatpush1.msra.mxu0 0.0
    %389 = vmatprep.subr.mxu0 0.0
    %390 = vmatpush1.msra.mxu0 0.0
    %391 = vmatprep.subr.mxu0 0.0
    %392 = vmatpush1.msra.mxu0 0.0
    %393 = vmatprep.subr.mxu0 0.0
    %394 = vmatpush1.msra.mxu0 0.0
    %395 = vmatprep.subr.mxu0 0.0
    %396 = vmatpush1.msra.mxu0 0.0
    %397 = vmatprep.subr.mxu0 0.0
    %398 = vmatpush1.msra.mxu0 0.0
    %399 = vmatprep.subr.mxu0 0.0
    %400 = vmatpush1.msra.mxu0 0.0
    %401 = vmatprep.subr.mxu0 0.0
    %402 = vmatpush1.msra.mxu0 0.0
    %403 = vmatprep.subr.mxu0 0.0
    %404 = vmatpush1.msra.mxu0 0.0
    %405 = vmatprep.subr.mxu0 0.0
    %406 = vmatpush1.msra.mxu0 0.0
    %407 = vmatprep.subr.mxu0 0.0
    %408 = vmatpush1.msra.mxu0 0.0
    %409 = vmatprep.subr.mxu0 0.0
    %410 = vmatpush1.msra.mxu0 0.0
    %411 = vmatprep.subr.mxu0 0.0
    %412 = vmatpush1.msra.mxu0 0.0
    %413 = vmatprep.subr.mxu0 0.0
    %414 = vmatpush1.msra.mxu0 0.0
    %415 = vmatprep.subr.mxu0 0.0
    %416 = vmatpush1.msra.mxu0 0.0
    %417 = vmatprep.subr.mxu0 0.0
    %418 = vmatpush1.msra.mxu0 0.0
    %419 = vmatprep.mubr.f32.mxu0 0.0
    %420 = vmatmul.mubr.f32.gmra.mrb[0].mxu0 %v350
    %v421 = vpop.f32.mrb[0].mxu0
    %v422 = vadd.f32 0.0, %v421
    %v423 = vpop.f32.mrb[0].mxu0
    %424 = vmatprep.mubr.f32.mxu0 0.0
    %425 = vmatmul.mubr.f32.gmra.mrb[0].mxu0 %v353
    %v426 = vpop.f32.mrb[0].mxu0
    %v427 = vadd.f32 0.0, %v426
    %v428 = vpop.f32.mrb[0].mxu0
    %429 = vdwg.mxu0
    %v430 = vld [vmem:[#allocation6] sm:$0x1]
    %v432 = vlaneseq
    %v433 = vshrl.u32 %v432, 7
    %v434 = vsub.s32 0, %v433
    %v435 = vrot.slane %v430, %v434
    %v437 = vadd.f32 %v422, %v435
    %v438 = vadd.f32 %v427, %v435
    %vm439 = vcmask 64512
    %440 = vst.msk [vmem:[%s5] sm:$0xff] %vm439, %v437
    %441 = vst.msk [vmem:[%s5 + $0x8] sm:$0xff] %vm439, %v438
    // Predicated region
    $region38: #{mlp_forward.1} parent=1 // pred_check
      _
    $region39: #{mlp_forward.1} parent=1 // pred_check_branch
      %443 = sbr.rel (0) target = $region41
    $region40: #{mlp_forward.1} parent=1 // pred_region
      _
    $region41: #{mlp_forward.1} parent=1 // pred_fallthru
      _
    // Predicated region
    $region42: #{mlp_forward.1} parent=1 // pred_check
      _
    $region43: #{mlp_forward.1} parent=1 // pred_check_branch
      %445 = sbr.rel (0) target = $region45
    $region44: #{mlp_forward.1} parent=1 // pred_region
      _
    $region45: #{mlp_forward.1} parent=1 // pred_fallthru
      _
    %446 = vsyncpa [#allocation3], 1
    %447 = vsyncpa [#allocation5], 1
    %448 = vsyncpa [#allocation8], 1

</llo_original>
